<compile_context>
chip_gen: v7x
topology: tpu7x:2x2x1
jax: 0.10.0
libtpu: 0.0.40
codegen_flags: <defaults>
</compile_context>

<pallas_src>
import jax
import jax.numpy as jnp
import numpy as np
from jax.experimental import pallas as pl
from jax.experimental.pallas import tpu as pltpu


def _round_up(x, m):
    return ((x + m - 1) // m) * m


def _vmem_limit_bytes(frac=0.70, cap=100 * 1024 * 1024):
    """Per-generation scoped-VMEM budget (v7x has only 64 MiB/TC)."""
    try:
        total = pltpu.get_tpu_info().vmem_capacity_bytes
    except Exception:
        total = 64 * 1024 * 1024  # conservative fallback (fits every generation)
    return int(min(total * frac, cap))


def _bf_row(bf, p_real, p_pad):
    """full_attn bias broadcast over pixels, with -1e30 on padded pixels."""
    valid = jnp.arange(p_pad)[None, :] < p_real
    return bf + jnp.where(valid, 0.0, -1e30).astype(jnp.float32)


# ----------------------------------------------------------------------------
# Kernel 1: generic row-tiled linear  y = x @ w + b   (bf16 operands, f32 acc)
#   Used for: visual extractor stand-in, encoder_attn (attn1), init_h, init_c.
# ----------------------------------------------------------------------------
def linear_kernel(x_ref, w_ref, b_ref, o_ref):
    y = jnp.dot(x_ref[...].astype(jnp.bfloat16), w_ref[...],
                preferred_element_type=jnp.float32) + b_ref[...]
    o_ref[...] = y.astype(o_ref.dtype)


def rowwise_linear(x, w, b, out_dtype, row_block=512):
    M, K = x.shape
    N = w.shape[1]
    rb = min(row_block, M)
    return pl.pallas_call(
        linear_kernel,
        grid=(pl.cdiv(M, rb),),
        in_specs=[
            pl.BlockSpec((rb, K), lambda i: (i, 0)),
            pl.BlockSpec((K, N), lambda i: (0, 0)),   # constant block: loaded once
            pl.BlockSpec((1, N), lambda i: (0, 0)),
        ],
        out_specs=pl.BlockSpec((rb, N), lambda i: (i, 0)),
        out_shape=jax.ShapeDtypeStruct((M, N), out_dtype),
        compiler_params=pltpu.CompilerParams(
            dimension_semantics=("parallel",),
            vmem_limit_bytes=_vmem_limit_bytes()),
    )(x, w, b)


# ----------------------------------------------------------------------------
# Kernel 2: recurrent decode step (attention + gate + LSTMCell); grid = (Td_pad,)
#   All grid-invariant operands live in single-buffered VMEM scratch, copied once
#   at t == 0 from HBM (memory_space=pl.ANY).  Outputs are chunked over time.
# ----------------------------------------------------------------------------
def decode_step_kernel(emb_hbm, enc_hbm, attn1_hbm, whp_hbm, wle_hbm, wla_hbm, wlh_hbm,
                       h0_ref, c0_ref, bhp_ref, wfb_ref, bfrow_ref, blstm_ref,
                       h_all_ref, alphas_ref,
                       h_sc, c_sc, emb_sc, enc_sc, attn1_sc,
                       whp_sc, wle_sc, wla_sc, wlh_sc, sem):
    t = pl.program_id(0)
    t_chunk = h_all_ref.shape[0]

    @pl.when(t == 0)
    def _():
        copies = [
            pltpu.make_async_copy(emb_hbm, emb_sc, sem.at[0]),
            pltpu.make_async_copy(enc_hbm, enc_sc, sem.at[1]),
            pltpu.make_async_copy(attn1_hbm, attn1_sc, sem.at[2]),
            pltpu.make_async_copy(whp_hbm, whp_sc, sem.at[3]),
            pltpu.make_async_copy(wle_hbm, wle_sc, sem.at[4]),
            pltpu.make_async_copy(wla_hbm, wla_sc, sem.at[5]),
            pltpu.make_async_copy(wlh_hbm, wlh_sc, sem.at[6]),
        ]
        for cp in copies:
            cp.start()
        h_sc[...] = h0_ref[...]
        c_sc[...] = c0_ref[...]
        for cp in copies:
            cp.wait()

    A = wfb_ref.shape[-1]
    D = h_sc.shape[-1]

    h = h_sc[...]                                    # (B, D) f32
    c = c_sc[...]                                    # (B, D) f32
    h_bf = h.astype(jnp.bfloat16)

    # fused h-projection: [decoder_attn | f_beta]  -> (B, A + E)
    hp = jnp.dot(h_bf, whp_sc[...], preferred_element_type=jnp.float32) + bhp_ref[...]
    attn2 = hp[:, :A]                                # (B, A) f32
    gate = jax.nn.sigmoid(hp[:, A:])                 # (B, E) f32

    # attention energies on the MXU; relu/add in bf16, accumulate in f32
    hidden = jnp.maximum(attn1_sc[...] + attn2.astype(jnp.bfloat16)[:, None, :], 0.0)
    e = jnp.einsum('bqa,bpa->bqp', wfb_ref[...], hidden,
                   preferred_element_type=jnp.float32)[:, 0, :] + bfrow_ref[...]

    # exact softmax over (padded) pixels; padded columns carry -1e30 via bfrow
    e_max = jnp.max(e, axis=-1, keepdims=True)
    p = jnp.exp(e - e_max)
    alpha = p / jnp.sum(p, axis=-1, keepdims=True)   # (B, Ppad) f32

    # alpha-weighted encoding on the MXU
    awe = jnp.einsum('bqp,bpe->bqe', alpha.astype(jnp.bfloat16)[:, None, :], enc_sc[...],
                     preferred_element_type=jnp.float32)[:, 0, :]     # (B, E) f32
    awe = gate * awe

    # LSTM cell: three bf16 dots summed in the f32 accumulator (no concat round-trip)
    emb_t = emb_sc[t]                                # (B, emb) bf16
    gates = (jnp.dot(emb_t, wle_sc[...], preferred_element_type=jnp.float32)
             + jnp.dot(awe.astype(jnp.bfloat16), wla_sc[...],
                       preferred_element_type=jnp.float32)
             + jnp.dot(h_bf, wlh_sc[...], preferred_element_type=jnp.float32)
             + blstm_ref[...])
    i_g = jax.nn.sigmoid(gates[:, 0:D])
    f_g = jax.nn.sigmoid(gates[:, D:2 * D])
    g_g = jnp.tanh(gates[:, 2 * D:3 * D])
    o_g = jax.nn.sigmoid(gates[:, 3 * D:4 * D])
    c_new = f_g * c + i_g * g_g
    h_new = o_g * jnp.tanh(c_new)
    h_sc[...] = h_new
    c_sc[...] = c_new

    # chunked outputs: one HBM writeback every t_chunk steps
    h_all_ref[t % t_chunk] = h_new.astype(h_all_ref.dtype)
    alphas_ref[t % t_chunk] = alpha


def decode_loop(emb_dec, enc, attn1, h0, c0, wf_b3, bf_row, prm, t_chunk):
    Td_pad, B, emb_dim = emb_dec.shape
    _, Ppad, E = enc.shape
    A = attn1.shape[-1]
    D = h0.shape[-1]

    def full(shape):
        nd = len(shape)
        return pl.BlockSpec(shape, lambda *_: (0,) * nd)

    any_spec = pl.BlockSpec(memory_space=pl.ANY)
    in_specs = [
        any_spec,                       # embeddings (Td_pad, B, emb)  bf16
        any_spec,                       # encoder_out (B, Ppad, E)     bf16
        any_spec,                       # attn1       (B, Ppad, A)     bf16
        any_spec,                       # w_hproj     (D, A+E)         bf16
        any_spec,                       # w_lstm_e    (emb, 4D)        bf16
        any_spec,                       # w_lstm_a    (E, 4D)          bf16
        any_spec,                       # w_lstm_h    (D, 4D)          bf16
        full((B, D)),                   # h0
        full((B, D)),                   # c0
        full(prm["b_hproj"].shape),     # b_hproj
        full(wf_b3.shape),              # full_attn weight, pre-broadcast (B,1,A)
        full(bf_row.shape),             # full_attn bias row (+ pixel mask)
        full(prm["b_lstm"].shape),      # b_lstm
    ]
    out_specs = [
        pl.BlockSpec((t_chunk, B, D), lambda t: (t // t_chunk, 0, 0)),
        pl.BlockSpec((t_chunk, B, Ppad), lambda t: (t // t_chunk, 0, 0)),
    ]
    out_shape = [
        jax.ShapeDtypeStruct((Td_pad, B, D), jnp.bfloat16),
        jax.ShapeDtypeStruct((Td_pad, B, Ppad), jnp.float32),
    ]
    scratch = [
        pltpu.VMEM((B, D), jnp.float32),                       # h state
        pltpu.VMEM((B, D), jnp.float32),                       # c state
        pltpu.VMEM((Td_pad, B, emb_dim), jnp.bfloat16),        # resident embeddings
        pltpu.VMEM((B, Ppad, E), jnp.bfloat16),                # resident encoder_out
        pltpu.VMEM((B, Ppad, A), jnp.bfloat16),                # resident attn1
        pltpu.VMEM(prm["w_hproj"].shape, jnp.bfloat16),        # resident weights
        pltpu.VMEM(prm["w_lstm_e"].shape, jnp.bfloat16),
        pltpu.VMEM(prm["w_lstm_a"].shape, jnp.bfloat16),
        pltpu.VMEM(prm["w_lstm_h"].shape, jnp.bfloat16),
        pltpu.SemaphoreType.DMA((7,)),
    ]
    h_all, alphas_t = pl.pallas_call(
        decode_step_kernel,
        grid_spec=pltpu.PrefetchScalarGridSpec(
            num_scalar_prefetch=0,
            grid=(Td_pad,),
            in_specs=in_specs,
            out_specs=out_specs,
            scratch_shapes=scratch,
        ),
        out_shape=out_shape,
        compiler_params=pltpu.CompilerParams(
            dimension_semantics=("arbitrary",),
            vmem_limit_bytes=_vmem_limit_bytes(),
        ),
    )(emb_dec, enc, attn1,
      prm["w_hproj"], prm["w_lstm_e"], prm["w_lstm_a"], prm["w_lstm_h"],
      h0, c0, prm["b_hproj"], wf_b3, bf_row, prm["b_lstm"])
    return h_all, alphas_t


# ----------------------------------------------------------------------------
# Kernel 3: post-loop fc head over all (t, b) rows; vocab axis is the OUTER grid
#           dim so the large weight block stays resident across the row sweep.
# ----------------------------------------------------------------------------
def fc_kernel(h_ref, m_ref, w_ref, b_ref, o_ref):
    hb = h_ref[...].astype(jnp.bfloat16)
    y = jnp.dot(hb, w_ref[...], preferred_element_type=jnp.float32) + b_ref[...]
    o_ref[...] = y * m_ref[...]


def fc_head(h_flat, mask_rows, wfc_p, bfc_p, row_block=512, col_block=1024):
    R, D = h_flat.shape
    Vp = wfc_p.shape[1]
    rb = min(row_block, R)
    cb = min(col_block, Vp)
    return pl.pallas_call(
        fc_kernel,
        grid=(pl.cdiv(Vp, cb), pl.cdiv(R, rb)),        # vocab outer, rows inner
        in_specs=[
            pl.BlockSpec((rb, D), lambda j, i: (i, 0)),
            pl.BlockSpec((rb, 1), lambda j, i: (i, 0)),
            pl.BlockSpec((D, cb), lambda j, i: (0, j)),   # constant across inner sweep
            pl.BlockSpec((1, cb), lambda j, i: (0, j)),
        ],
        out_specs=pl.BlockSpec((rb, cb), lambda j, i: (i, j)),
        out_shape=jax.ShapeDtypeStruct((R, Vp), jnp.float32),
        compiler_params=pltpu.CompilerParams(
            dimension_semantics=("parallel", "parallel"),
            vmem_limit_bytes=_vmem_limit_bytes()),
    )(h_flat, mask_rows, wfc_p, bfc_p)


# ----------------------------------------------------------------------------
# Glue: full SATModel train forward
# ----------------------------------------------------------------------------
def sat_forward_train(images, targets, caption_lens, prm, t_chunk=8):
    B, C, H, W = images.shape
    P = H * W
    A = prm["attn_dim"]
    V = prm["vocab_size"]

    # visual extractor stand-in (per-pixel linear); cast input to bf16 pre-call
    x = jnp.transpose(images, (0, 2, 3, 1)).reshape(B * P, C).astype(jnp.bfloat16)
    feats = rowwise_linear(x, prm["w_v"], prm["b_v"], jnp.bfloat16)   # (B*P, E)
    E = feats.shape[-1]
    enc = feats.reshape(B, P, E)

    lens = caption_lens[:, 0]
    sort_idx = jnp.argsort(-lens)
    lens_sorted = lens[sort_idx]
    enc = enc[sort_idx]
    captions = targets[sort_idx]
    decode_lens = lens_sorted - 1
    Td = int(jnp.max(decode_lens))                                    # static trip count

    # init hidden state from the mean over *real* pixels (tiny row-tiled linears)
    mean_enc = jnp.mean(enc.astype(jnp.float32), axis=1).astype(jnp.bfloat16)
    h0 = rowwise_linear(mean_enc, prm["wh"], prm["bh"], jnp.float32)  # (B, D)
    c0 = rowwise_linear(mean_enc, prm["wc"], prm["bc"], jnp.float32)  # (B, D)

    # pad pixels to a lane-dense multiple of 128; padded energies masked via bf_row
    Ppad = _round_up(P, 128)
    enc_pad = jnp.pad(enc, ((0, 0), (0, Ppad - P), (0, 0)))
    attn1 = rowwise_linear(enc_pad.reshape(B * Ppad, E), prm["we"], prm["be"],
                           jnp.bfloat16).reshape(B, Ppad, A)
    bf_row = _bf_row(prm["bf"], P, Ppad)
    wf_b3 = jnp.broadcast_to(prm["wf_row"].reshape(1, 1, A), (B, 1, A))

    # decoder embeddings, time-major, padded to a multiple of t_chunk steps
    Td_pad = _round_up(Td, t_chunk)
    emb = jnp.take(prm["emb_table"], captions, axis=0).astype(jnp.bfloat16)
    emb_dec = jnp.transpose(emb[:, :Td, :], (1, 0, 2))                # (Td, B, emb)
    emb_dec = jnp.pad(emb_dec, ((0, Td_pad - Td), (0, 0), (0, 0)))

    h_all, alphas_t = decode_loop(emb_dec, enc_pad, attn1, h0, c0,
                                  wf_b3, bf_row, prm, t_chunk)

    # rows with t >= decode_len[b] are zeroed, like the torch.zeros init
    mask_bt = (jnp.arange(Td)[None, :] < decode_lens[:, None]).astype(jnp.float32)
    mask_rows = jnp.transpose(mask_bt).reshape(Td * B, 1)
    D = h_all.shape[-1]
    preds_flat = fc_head(h_all[:Td].reshape(Td * B, D), mask_rows,
                         prm["wfc_p"], prm["bfc_p"])                  # (Td*B, Vp)
    preds = jnp.transpose(preds_flat.reshape(Td, B, -1), (1, 0, 2))[:, :, :V]
    alphas = jnp.transpose(alphas_t[:Td], (1, 0, 2))[:, :, :P] * mask_bt[:, :, None]
    return preds, captions, decode_lens, alphas


# ----------------------------------------------------------------------------
# Parameter construction (raw fp32, PyTorch-like) and kernel-ready preparation
# ----------------------------------------------------------------------------
def make_params(key, C, E, A, emb_dim, D, V):
    ks = jax.random.split(key, 20)
    u = lambda k, shape, s=0.1: jax.random.uniform(k, shape, jnp.float32, -s, s)
    return dict(
        w_v=u(ks[0], (C, E)), b_v=u(ks[1], (1, E)),                 # visual extractor
        we=u(ks[2], (E, A)), be=u(ks[3], (1, A)),                   # encoder_attn
        wd=u(ks[4], (D, A)), bd=u(ks[5], (1, A)),                   # decoder_attn
        wf=u(ks[6], (1, A)), bf=u(ks[7], (1, 1)),                   # full_attn (out dim 1)
        emb_table=u(ks[8], (V, emb_dim)),                           # embedding
        wih=u(ks[9], (emb_dim + E, 4 * D)),                         # LSTMCell W_ih^T
        whh=u(ks[10], (D, 4 * D)),                                  # LSTMCell W_hh^T
        blstm=u(ks[11], (1, 4 * D)),                                # b_ih + b_hh
        wh=u(ks[12], (E, D)), bh=u(ks[13], (1, D)),                 # init_h
        wc=u(ks[14], (E, D)), bc=u(ks[15], (1, D)),                 # init_c
        wbeta=u(ks[16], (D, E)), bbeta=u(ks[17], (1, E)),           # f_beta
        wfc=u(ks[18], (D, V)), bfc=jnp.zeros((1, V), jnp.float32),  # fc (bias 0)
    )


def prepare_params(raw, V):
    bf16 = jnp.bfloat16
    Vp = _round_up(V, 128)
    emb_dim = raw["emb_table"].shape[1]
    return dict(
        w_v=raw["w_v"].astype(bf16), b_v=raw["b_v"],
        we=raw["we"].astype(bf16), be=raw["be"],
        wh=raw["wh"].astype(bf16), bh=raw["bh"],
        wc=raw["wc"].astype(bf16), bc=raw["bc"],
        # fused [decoder_attn | f_beta] projection of h
        w_hproj=jnp.concatenate([raw["wd"], raw["wbeta"]], axis=1).astype(bf16),
        b_hproj=jnp.concatenate([raw["bd"], raw["bbeta"]], axis=1),
        wf_row=raw["wf"].astype(bf16),
        bf=raw["bf"],
        # split LSTM weights (emb / awe / h inputs), summed in one f32 accumulator
        w_lstm_e=raw["wih"][:emb_dim].astype(bf16),
        w_lstm_a=raw["wih"][emb_dim:].astype(bf16),
        w_lstm_h=raw["whh"].astype(bf16),
        b_lstm=raw["blstm"],
        # fc head padded to lane-dense vocab
        wfc_p=jnp.pad(raw["wfc"], ((0, 0), (0, Vp - V))).astype(bf16),
        bfc_p=jnp.pad(raw["bfc"], ((0, 0), (0, Vp - V))),
        emb_table=raw["emb_table"],
        vocab_size=V,
        attn_dim=raw["wd"].shape[1],
    )


# ----------------------------------------------------------------------------
# Pure-JAX reference mirroring the kernel's bf16-storage / f32-accumulate math
# ----------------------------------------------------------------------------
def reference_forward(images, targets, caption_lens, prm):
    bf16, f32 = jnp.bfloat16, jnp.float32
    B, C, H, W = images.shape
    P = H * W
    Ppad = _round_up(P, 128)
    A = prm["attn_dim"]
    V = prm["vocab_size"]

    x = jnp.transpose(images, (0, 2, 3, 1)).reshape(B * P, C).astype(bf16)
    feats = (jnp.dot(x, prm["w_v"], preferred_element_type=f32) + prm["b_v"]).astype(bf16)
    E = feats.shape[-1]
    enc = feats.reshape(B, P, E)

    lens = caption_lens[:, 0]
    sort_idx = jnp.argsort(-lens)
    lens_sorted = lens[sort_idx]
    enc = enc[sort_idx]
    caps = targets[sort_idx]
    decode_lens = lens_sorted - 1
    Td = int(jnp.max(decode_lens))

    mean_enc = jnp.mean(enc.astype(f32), axis=1).astype(bf16)
    h = jnp.dot(mean_enc, prm["wh"], preferred_element_type=f32) + prm["bh"]
    c = jnp.dot(mean_enc, prm["wc"], preferred_element_type=f32) + prm["bc"]

    enc = jnp.pad(enc, ((0, 0), (0, Ppad - P), (0, 0)))
    attn1 = (jnp.dot(enc.reshape(B * Ppad, E), prm["we"], preferred_element_type=f32)
             + prm["be"]).astype(bf16).reshape(B, Ppad, A)
    bf_row = _bf_row(prm["bf"], P, Ppad)
    wf_b = jnp.broadcast_to(prm["wf_row"].reshape(1, 1, A), (B, 1, A))

    embs = jnp.take(prm["emb_table"], caps, axis=0).astype(bf16)
    D = h.shape[-1]
    mask = (jnp.arange(Td)[None, :] < decode_lens[:, None]).astype(f32)   # (B, Td)

    preds_all, alphas_all = [], []
    for t in range(Td):
        h_bf = h.astype(bf16)
        hp = jnp.dot(h_bf, prm["w_hproj"], preferred_element_type=f32) + prm["b_hproj"]
        attn2 = hp[:, :A]
        gate = jax.nn.sigmoid(hp[:, A:])
        hidden = jnp.maximum(attn1 + attn2.astype(bf16)[:, None, :], 0.0)
        e = jnp.einsum('bqa,bpa->bqp', wf_b, hidden,
                       preferred_element_type=f32)[:, 0, :] + bf_row
        e_max = jnp.max(e, axis=-1, keepdims=True)
        pe = jnp.exp(e - e_max)
        alpha = pe / jnp.sum(pe, axis=-1, keepdims=True)
        awe = jnp.einsum('bqp,bpe->bqe', alpha.astype(bf16)[:, None, :], enc,
                         preferred_element_type=f32)[:, 0, :]
        awe = gate * awe
        gates = (jnp.dot(embs[:, t, :], prm["w_lstm_e"], preferred_element_type=f32)
                 + jnp.dot(awe.astype(bf16), prm["w_lstm_a"], preferred_element_type=f32)
                 + jnp.dot(h_bf, prm["w_lstm_h"], preferred_element_type=f32)
                 + prm["b_lstm"])
        i_g = jax.nn.sigmoid(gates[:, :D])
        f_g = jax.nn.sigmoid(gates[:, D:2 * D])
        g_g = jnp.tanh(gates[:, 2 * D:3 * D])
        o_g = jax.nn.sigmoid(gates[:, 3 * D:])
        c = f_g * c + i_g * g_g
        h = o_g * jnp.tanh(c)
        pred = jnp.dot(h.astype(bf16), prm["wfc_p"], preferred_element_type=f32) + prm["bfc_p"]
        preds_all.append(pred[:, :V] * mask[:, t:t + 1])
        alphas_all.append(alpha[:, :P] * mask[:, t:t + 1])
    return (jnp.stack(preds_all, axis=1), caps, decode_lens,
            jnp.stack(alphas_all, axis=1))


if __name__ == "__main__":
    # small shapes consistent with the module
    B, C, H, W = 2, 8, 16, 16          # images
    E, A, emb_dim, D, V, T = 32, 32, 16, 32, 40, 8
    # E = encoder_dim (d_vf), A = attention_dim (d_model), D = decoder_dim (d_ff)

    raw = make_params(jax.random.PRNGKey(0), C, E, A, emb_dim, D, V)
    prm = prepare_params(raw, V)

    k1, k2 = jax.random.split(jax.random.PRNGKey(1))
    images = jax.random.normal(k1, (B, C, H, W), jnp.float32)
    targets = jax.random.randint(k2, (B, T), 0, V, dtype=jnp.int32)
    caption_lens = jnp.array([[6], [8]], dtype=jnp.int32)

    preds, caps_sorted, decode_lens, alphas = sat_forward_train(
        images, targets, caption_lens, prm)
    jax.block_until_ready((preds, alphas, caps_sorted))

    ref_preds, ref_caps, ref_dl, ref_alphas = reference_forward(
        images, targets, caption_lens, prm)
    np.testing.assert_allclose(np.asarray(preds), np.asarray(ref_preds),
                               rtol=2e-2, atol=2e-2)
    np.testing.assert_allclose(np.asarray(alphas), np.asarray(ref_alphas),
                               rtol=2e-2, atol=2e-2)
    np.testing.assert_array_equal(np.asarray(caps_sorted), np.asarray(ref_caps))

    print("KERNEL_OK")
</pallas_src>

<mosaic_0001>
module attributes {stable_mosaic.version = 11 : i64} {
  func.func @linear_kernel(%arg0: i32, %arg1: memref<512x8xbf16, #tpu.memory_space<vmem>>, %arg2: memref<8x32xbf16, #tpu.memory_space<vmem>>, %arg3: memref<1x32xf32, #tpu.memory_space<vmem>>, %arg4: memref<512x32xbf16, #tpu.memory_space<vmem>>) attributes {dimension_semantics = [#tpu.dimension_semantics<parallel>], iteration_bounds = array<i64: 1>, scalar_prefetch = 0 : i64, scratch_operands = 0 : i64, tpu.core_type = #tpu.core_type<tc>, window_params = [{transform_indices = @transform_0, window_bounds = array<i64: 512, 8>}, {pipeline_mode = #tpu.pipeline_mode<synchronous>, transform_indices = @transform_1, window_bounds = array<i64: 8, 32>}, {pipeline_mode = #tpu.pipeline_mode<synchronous>, transform_indices = @transform_2, window_bounds = array<i64: 1, 32>}, {transform_indices = @transform_3, window_bounds = array<i64: 512, 32>}]} {
    %c0 = arith.constant 0 : index
    %c0_0 = arith.constant 0 : index
    %0 = vector.load %arg1[%c0, %c0_0] : memref<512x8xbf16, #tpu.memory_space<vmem>>, vector<512x8xbf16>
    %c0_1 = arith.constant 0 : index
    %c0_2 = arith.constant 0 : index
    %1 = vector.load %arg2[%c0_1, %c0_2] : memref<8x32xbf16, #tpu.memory_space<vmem>>, vector<8x32xbf16>
    %cst = arith.constant dense<0.000000e+00> : vector<512x32xf32>
    %2 = tpu.matmul %0, %1, %cst {dimension_numbers = #tpu.dot_dimension_numbers<[1], [0], [0], [1], [0, 0, 1, 1], [], []>} : vector<512x8xbf16>, vector<8x32xbf16>, vector<512x32xf32> -> vector<512x32xf32>
    %c0_3 = arith.constant 0 : index
    %c0_4 = arith.constant 0 : index
    %3 = vector.load %arg3[%c0_3, %c0_4] : memref<1x32xf32, #tpu.memory_space<vmem>>, vector<1x32xf32>
    %4 = vector.broadcast %3 : vector<1x32xf32> to vector<512x32xf32>
    %5 = arith.addf %2, %4 : vector<512x32xf32>
    %6 = arith.truncf %5 : vector<512x32xf32> to vector<512x32xbf16>
    %c0_5 = arith.constant 0 : index
    %c0_6 = arith.constant 0 : index
    %7 = vector.load %arg4[%c0_5, %c0_6] : memref<512x32xbf16, #tpu.memory_space<vmem>>, vector<512x32xbf16>
    tpu.vector_store %arg4[%c0_5, %c0_6], %6 {strides = array<i32>} : memref<512x32xbf16, #tpu.memory_space<vmem>>, vector<512x32xbf16>,
    return
  }
  func.func @transform_0(%arg0: i32) -> (i32, i32) {
    %c0_i32 = arith.constant 0 : i32
    %c0_i32_0 = arith.constant 0 : i32
    return %arg0, %c0_i32 : i32, i32
  }
  func.func @transform_1(%arg0: i32) -> (i32, i32) {
    %c0_i32 = arith.constant 0 : i32
    %c0_i32_0 = arith.constant 0 : i32
    %c0_i32_1 = arith.constant 0 : i32
    return %c0_i32, %c0_i32_0 : i32, i32
  }
  func.func @transform_2(%arg0: i32) -> (i32, i32) {
    %c0_i32 = arith.constant 0 : i32
    %c0_i32_0 = arith.constant 0 : i32
    %c0_i32_1 = arith.constant 0 : i32
    return %c0_i32, %c0_i32_0 : i32, i32
  }
  func.func @transform_3(%arg0: i32) -> (i32, i32) {
    %c0_i32 = arith.constant 0 : i32
    %c0_i32_0 = arith.constant 0 : i32
    return %arg0, %c0_i32 : i32, i32
  }
}

</mosaic_0001>

<llo_original>
// kernel: tpu_custom_call.1
$region0: #{tpu_custom_call.1}
  #allocation0 [shape = 'u32[]', space=smem, size = 0x4, offset = 0x4, fixed_abs, tag = 'smem constant byte address 0x4 - core index']
  #allocation1 [shape = 'u32[144,128]{1,0:T(1,128)}', space=vmem, size = 0x12000, scoped, tag = 'internal scratch']
  %s0 = inlined_call_operand.vmem [shape: bf16[512,8], index: 0, kind: input, shape index: {}]
  %s1 = inlined_call_operand.vmem [shape: bf16[8,32], index: 1, kind: input, shape index: {}]
  %s2 = inlined_call_operand.vmem [shape: f32[1,32], index: 2, kind: input, shape index: {}]
  %s3 = inlined_call_operand.vmem [shape: bf16[512,32], index: 3, kind: output, shape index: {}]
  %s4 = sld [smem:[#allocation0]]
  $region22: #{tpu_custom_call.1} parent=0
    _
  %s6 = ssub.s32 1, %s4
  %s7 = scalar_select 0, %s6, %s4
  // Predicated region
  $region2: #{tpu_custom_call.1} parent=0 // pred_check
    _
  $region3: #{tpu_custom_call.1} parent=0 // pred_check_branch
    %9 = sbr.rel (0) target = $region5
  $region4: #{tpu_custom_call.1} parent=0 // pred_region
    _
  $region5: #{tpu_custom_call.1} parent=0 // pred_fallthru
    _
  // Predicated region
  $region6: #{tpu_custom_call.1} parent=0 // pred_check
    _
  $region7: #{tpu_custom_call.1} parent=0 // pred_check_branch
    %11 = sbr.rel (0) target = $region9
  $region8: #{tpu_custom_call.1} parent=0 // pred_region
    _
  $region9: #{tpu_custom_call.1} parent=0 // pred_fallthru
    _
  // Predicated region
  $region10: #{tpu_custom_call.1} parent=0 // pred_check
    _
  $region11: #{tpu_custom_call.1} parent=0 // pred_check_branch
    %13 = sbr.rel (0) target = $region13
  $region12: #{tpu_custom_call.1} parent=0 // pred_region
    _
  $region13: #{tpu_custom_call.1} parent=0 // pred_fallthru
    _
  %v15 = vld [vmem:[%s0] sm:$0xf]
  %v16 = vld [vmem:[%s0 + $0x4] sm:$0xf]
  %v17 = vld [vmem:[%s0 + $0x8] sm:$0xf]
  %v18 = vld [vmem:[%s0 + $0xc] sm:$0xf]
  %v19 = vld [vmem:[%s0 + $0x10] sm:$0xf]
  %v20 = vld [vmem:[%s0 + $0x14] sm:$0xf]
  %v21 = vld [vmem:[%s0 + $0x18] sm:$0xf]
  %v22 = vld [vmem:[%s0 + $0x1c] sm:$0xf]
  %v23 = vld [vmem:[%s0 + $0x20] sm:$0xf]
  %v24 = vld [vmem:[%s0 + $0x24] sm:$0xf]
  %v25 = vld [vmem:[%s0 + $0x28] sm:$0xf]
  %v26 = vld [vmem:[%s0 + $0x2c] sm:$0xf]
  %v27 = vld [vmem:[%s0 + $0x30] sm:$0xf]
  %v28 = vld [vmem:[%s0 + $0x34] sm:$0xf]
  %v29 = vld [vmem:[%s0 + $0x38] sm:$0xf]
  %v30 = vld [vmem:[%s0 + $0x3c] sm:$0xf]
  %v31 = vld [vmem:[%s0 + $0x40] sm:$0xf]
  %v32 = vld [vmem:[%s0 + $0x44] sm:$0xf]
  %v33 = vld [vmem:[%s0 + $0x48] sm:$0xf]
  %v34 = vld [vmem:[%s0 + $0x4c] sm:$0xf]
  %v35 = vld [vmem:[%s0 + $0x50] sm:$0xf]
  %v36 = vld [vmem:[%s0 + $0x54] sm:$0xf]
  %v37 = vld [vmem:[%s0 + $0x58] sm:$0xf]
  %v38 = vld [vmem:[%s0 + $0x5c] sm:$0xf]
  %v39 = vld [vmem:[%s0 + $0x60] sm:$0xf]
  %v40 = vld [vmem:[%s0 + $0x64] sm:$0xf]
  %v41 = vld [vmem:[%s0 + $0x68] sm:$0xf]
  %v42 = vld [vmem:[%s0 + $0x6c] sm:$0xf]
  %v43 = vld [vmem:[%s0 + $0x70] sm:$0xf]
  %v44 = vld [vmem:[%s0 + $0x74] sm:$0xf]
  %v45 = vld [vmem:[%s0 + $0x78] sm:$0xf]
  %v46 = vld [vmem:[%s0 + $0x7c] sm:$0xf]
  %v47 = vld [vmem:[%s0 + $0x80] sm:$0xf]
  %v48 = vld [vmem:[%s0 + $0x84] sm:$0xf]
  %v49 = vld [vmem:[%s0 + $0x88] sm:$0xf]
  %v50 = vld [vmem:[%s0 + $0x8c] sm:$0xf]
  %v51 = vld [vmem:[%s0 + $0x90] sm:$0xf]
  %v52 = vld [vmem:[%s0 + $0x94] sm:$0xf]
  %v53 = vld [vmem:[%s0 + $0x98] sm:$0xf]
  %v54 = vld [vmem:[%s0 + $0x9c] sm:$0xf]
  %v55 = vld [vmem:[%s0 + $0xa0] sm:$0xf]
  %v56 = vld [vmem:[%s0 + $0xa4] sm:$0xf]
  %v57 = vld [vmem:[%s0 + $0xa8] sm:$0xf]
  %v58 = vld [vmem:[%s0 + $0xac] sm:$0xf]
  %v59 = vld [vmem:[%s0 + $0xb0] sm:$0xf]
  %v60 = vld [vmem:[%s0 + $0xb4] sm:$0xf]
  %v61 = vld [vmem:[%s0 + $0xb8] sm:$0xf]
  %v62 = vld [vmem:[%s0 + $0xbc] sm:$0xf]
  %v63 = vld [vmem:[%s0 + $0xc0] sm:$0xf]
  %v64 = vld [vmem:[%s0 + $0xc4] sm:$0xf]
  %v65 = vld [vmem:[%s0 + $0xc8] sm:$0xf]
  %v66 = vld [vmem:[%s0 + $0xcc] sm:$0xf]
  %v67 = vld [vmem:[%s0 + $0xd0] sm:$0xf]
  %v68 = vld [vmem:[%s0 + $0xd4] sm:$0xf]
  %v69 = vld [vmem:[%s0 + $0xd8] sm:$0xf]
  %v70 = vld [vmem:[%s0 + $0xdc] sm:$0xf]
  %v71 = vld [vmem:[%s0 + $0xe0] sm:$0xf]
  %v72 = vld [vmem:[%s0 + $0xe4] sm:$0xf]
  %v73 = vld [vmem:[%s0 + $0xe8] sm:$0xf]
  %v74 = vld [vmem:[%s0 + $0xec] sm:$0xf]
  %v75 = vld [vmem:[%s0 + $0xf0] sm:$0xf]
  %v76 = vld [vmem:[%s0 + $0xf4] sm:$0xf]
  %v77 = vld [vmem:[%s0 + $0xf8] sm:$0xf]
  %v78 = vld [vmem:[%s0 + $0xfc] sm:$0xf]
  %v79 = vld [vmem:[%s1] sm:$0xf]
  %v80 = vld [vmem:[%s2] sm:$0x1]
  %v82 = vlaneseq
  %v83 = vshrl.u32 %v82, 7
  %v84 = vsub.s32 0, %v83
  %v85 = vrot.slane %v80, %v84
  %v151 = vunpack.c.l.b16 %v15
  %v152 = vunpack.c.l.b16 %v16
  %v153 = vunpack.c.l.b16 %v17
  %v154 = vunpack.c.l.b16 %v18
  %v155 = vunpack.c.l.b16 %v19
  %v156 = vunpack.c.l.b16 %v20
  %v157 = vunpack.c.l.b16 %v21
  %v158 = vunpack.c.l.b16 %v22
  %v159 = vunpack.c.l.b16 %v23
  %v160 = vunpack.c.l.b16 %v24
  %v161 = vunpack.c.l.b16 %v25
  %v162 = vunpack.c.l.b16 %v26
  %v163 = vunpack.c.l.b16 %v27
  %v164 = vunpack.c.l.b16 %v28
  %v165 = vunpack.c.l.b16 %v29
  %v166 = vunpack.c.l.b16 %v30
  %v167 = vunpack.c.l.b16 %v31
  %v168 = vunpack.c.l.b16 %v32
  %v169 = vunpack.c.l.b16 %v33
  %v170 = vunpack.c.l.b16 %v34
  %v171 = vunpack.c.l.b16 %v35
  %v172 = vunpack.c.l.b16 %v36
  %v173 = vunpack.c.l.b16 %v37
  %v174 = vunpack.c.l.b16 %v38
  %v175 = vunpack.c.l.b16 %v39
  %v176 = vunpack.c.l.b16 %v40
  %v177 = vunpack.c.l.b16 %v41
  %v178 = vunpack.c.l.b16 %v42
  %v179 = vunpack.c.l.b16 %v43
  %v180 = vunpack.c.l.b16 %v44
  %v181 = vunpack.c.l.b16 %v45
  %v182 = vunpack.c.l.b16 %v46
  %v183 = vunpack.c.l.b16 %v47
  %v184 = vunpack.c.l.b16 %v48
  %v185 = vunpack.c.l.b16 %v49
  %v186 = vunpack.c.l.b16 %v50
  %v187 = vunpack.c.l.b16 %v51
  %v188 = vunpack.c.l.b16 %v52
  %v189 = vunpack.c.l.b16 %v53
  %v190 = vunpack.c.l.b16 %v54
  %v191 = vunpack.c.l.b16 %v55
  %v192 = vunpack.c.l.b16 %v56
  %v193 = vunpack.c.l.b16 %v57
  %v194 = vunpack.c.l.b16 %v58
  %v195 = vunpack.c.l.b16 %v59
  %v196 = vunpack.c.l.b16 %v60
  %v197 = vunpack.c.l.b16 %v61
  %v198 = vunpack.c.l.b16 %v62
  %v199 = vunpack.c.l.b16 %v63
  %v200 = vunpack.c.l.b16 %v64
  %v201 = vunpack.c.l.b16 %v65
  %v202 = vunpack.c.l.b16 %v66
  %v203 = vunpack.c.l.b16 %v67
  %v204 = vunpack.c.l.b16 %v68
  %v205 = vunpack.c.l.b16 %v69
  %v206 = vunpack.c.l.b16 %v70
  %v207 = vunpack.c.l.b16 %v71
  %v208 = vunpack.c.l.b16 %v72
  %v209 = vunpack.c.l.b16 %v73
  %v210 = vunpack.c.l.b16 %v74
  %v211 = vunpack.c.l.b16 %v75
  %v212 = vunpack.c.l.b16 %v76
  %v213 = vunpack.c.l.b16 %v77
  %v214 = vunpack.c.l.b16 %v78
  %v215 = vpack.c.b16 %v152, %v151
  %v216 = vpack.c.b16 %v154, %v153
  %v217 = vpack.c.b16 %v156, %v155
  %v218 = vpack.c.b16 %v158, %v157
  %v219 = vpack.c.b16 %v160, %v159
  %v220 = vpack.c.b16 %v162, %v161
  %v221 = vpack.c.b16 %v164, %v163
  %v222 = vpack.c.b16 %v166, %v165
  %v223 = vpack.c.b16 %v168, %v167
  %v224 = vpack.c.b16 %v170, %v169
  %v225 = vpack.c.b16 %v172, %v171
  %v226 = vpack.c.b16 %v174, %v173
  %v227 = vpack.c.b16 %v176, %v175
  %v228 = vpack.c.b16 %v178, %v177
  %v229 = vpack.c.b16 %v180, %v179
  %v230 = vpack.c.b16 %v182, %v181
  %v231 = vpack.c.b16 %v184, %v183
  %v232 = vpack.c.b16 %v186, %v185
  %v233 = vpack.c.b16 %v188, %v187
  %v234 = vpack.c.b16 %v190, %v189
  %v235 = vpack.c.b16 %v192, %v191
  %v236 = vpack.c.b16 %v194, %v193
  %v237 = vpack.c.b16 %v196, %v195
  %v238 = vpack.c.b16 %v198, %v197
  %v239 = vpack.c.b16 %v200, %v199
  %v240 = vpack.c.b16 %v202, %v201
  %v241 = vpack.c.b16 %v204, %v203
  %v242 = vpack.c.b16 %v206, %v205
  %v243 = vpack.c.b16 %v208, %v207
  %v244 = vpack.c.b16 %v210, %v209
  %v245 = vpack.c.b16 %v212, %v211
  %v246 = vpack.c.b16 %v214, %v213
  %vm247 = vcmask 64512
  %v249 = vsel %vm247, %v215, 0
  %v252 = vsel %vm247, %v216, 0
  %v255 = vsel %vm247, %v217, 0
  %v258 = vsel %vm247, %v218, 0
  %v261 = vsel %vm247, %v219, 0
  %v264 = vsel %vm247, %v220, 0
  %v267 = vsel %vm247, %v221, 0
  %v270 = vsel %vm247, %v222, 0
  %v273 = vsel %vm247, %v223, 0
  %v276 = vsel %vm247, %v224, 0
  %v279 = vsel %vm247, %v225, 0
  %v282 = vsel %vm247, %v226, 0
  %v285 = vsel %vm247, %v227, 0
  %v288 = vsel %vm247, %v228, 0
  %v291 = vsel %vm247, %v229, 0
  %v294 = vsel %vm247, %v230, 0
  %v297 = vsel %vm247, %v231, 0
  %v300 = vsel %vm247, %v232, 0
  %v303 = vsel %vm247, %v233, 0
  %v306 = vsel %vm247, %v234, 0
  %v309 = vsel %vm247, %v235, 0
  %v312 = vsel %vm247, %v236, 0
  %v315 = vsel %vm247, %v237, 0
  %v318 = vsel %vm247, %v238, 0
  %v321 = vsel %vm247, %v239, 0
  %v324 = vsel %vm247, %v240, 0
  %v327 = vsel %vm247, %v241, 0
  %v330 = vsel %vm247, %v242, 0
  %v333 = vsel %vm247, %v243, 0
  %v336 = vsel %vm247, %v244, 0
  %v339 = vsel %vm247, %v245, 0
  %v342 = vsel %vm247, %v246, 0
  %vm344 = vcmask 1043456
  %v346 = vsel %vm344, %v79, 0
  %348 = vmatprep.subr.bf16.mxu0 0
  %349 = vmatpush1.bf16.msra.mxu0 %v346
  %350 = vmatprep.subr.bf16.mxu0 0
  %351 = vmatpush1.bf16.msra.mxu0 0
  %352 = vmatprep.subr.bf16.mxu0 0
  %353 = vmatpush1.bf16.msra.mxu0 0
  %354 = vmatprep.subr.bf16.mxu0 0
  %355 = vmatpush1.bf16.msra.mxu0 0
  %356 = vmatprep.subr.bf16.mxu0 0
  %357 = vmatpush1.bf16.msra.mxu0 0
  %358 = vmatprep.subr.bf16.mxu0 0
  %359 = vmatpush1.bf16.msra.mxu0 0
  %360 = vmatprep.subr.bf16.mxu0 0
  %361 = vmatpush1.bf16.msra.mxu0 0
  %362 = vmatprep.subr.bf16.mxu0 0
  %363 = vmatpush1.bf16.msra.mxu0 0
  %364 = vmatprep.subr.bf16.mxu0 0
  %365 = vmatpush1.bf16.msra.mxu0 0
  %366 = vmatprep.subr.bf16.mxu0 0
  %367 = vmatpush1.bf16.msra.mxu0 0
  %368 = vmatprep.subr.bf16.mxu0 0
  %369 = vmatpush1.bf16.msra.mxu0 0
  %370 = vmatprep.subr.bf16.mxu0 0
  %371 = vmatpush1.bf16.msra.mxu0 0
  %372 = vmatprep.subr.bf16.mxu0 0
  %373 = vmatpush1.bf16.msra.mxu0 0
  %374 = vmatprep.subr.bf16.mxu0 0
  %375 = vmatpush1.bf16.msra.mxu0 0
  %376 = vmatprep.subr.bf16.mxu0 0
  %377 = vmatpush1.bf16.msra.mxu0 0
  %378 = vmatprep.subr.bf16.mxu0 0
  %379 = vmatpush1.bf16.msra.mxu0 0
  %380 = vmatprep.mubr.bf16.mxu0 0
  %381 = vmatmul.mubr.bf16.gmra.mrb[0].mxu0 %v249
  %v382 = vpop.f32.mrb[0].mxu0
  %v383 = vadd.f32 %v85, %v382
  %v384 = vpop.f32.mrb[0].mxu0
  %v385 = vpop.f32.mrb[0].mxu0
  %v386 = vadd.f32 %v85, %v385
  %v387 = vpop.f32.mrb[0].mxu0
  %388 = vmatprep.mubr.bf16.mxu0 0
  %389 = vmatmul.mubr.bf16.gmra.mrb[0].mxu0 %v252
  %v390 = vpop.f32.mrb[0].mxu0
  %v391 = vadd.f32 %v85, %v390
  %v392 = vpop.f32.mrb[0].mxu0
  %v393 = vpop.f32.mrb[0].mxu0
  %v394 = vadd.f32 %v85, %v393
  %v395 = vpop.f32.mrb[0].mxu0
  %396 = vmatprep.mubr.bf16.mxu0 0
  %397 = vmatmul.mubr.bf16.gmra.mrb[0].mxu0 %v255
  %v398 = vpop.f32.mrb[0].mxu0
  %v399 = vadd.f32 %v85, %v398
  %v400 = vpop.f32.mrb[0].mxu0
  %v401 = vpop.f32.mrb[0].mxu0
  %v402 = vadd.f32 %v85, %v401
  %v403 = vpop.f32.mrb[0].mxu0
  %404 = vmatprep.mubr.bf16.mxu0 0
  %405 = vmatmul.mubr.bf16.gmra.mrb[0].mxu0 %v258
  %v406 = vpop.f32.mrb[0].mxu0
  %v407 = vadd.f32 %v85, %v406
  %v408 = vpop.f32.mrb[0].mxu0
  %v409 = vpop.f32.mrb[0].mxu0
  %v410 = vadd.f32 %v85, %v409
  %v411 = vpop.f32.mrb[0].mxu0
  %412 = vmatprep.mubr.bf16.mxu0 0
  %413 = vmatmul.mubr.bf16.gmra.mrb[0].mxu0 %v261
  %v414 = vpop.f32.mrb[0].mxu0
  %v415 = vadd.f32 %v85, %v414
  %v416 = vpop.f32.mrb[0].mxu0
  %v417 = vpop.f32.mrb[0].mxu0
  %v418 = vadd.f32 %v85, %v417
  %v419 = vpop.f32.mrb[0].mxu0
  %420 = vmatprep.mubr.bf16.mxu0 0
  %421 = vmatmul.mubr.bf16.gmra.mrb[0].mxu0 %v264
  %v422 = vpop.f32.mrb[0].mxu0
  %v423 = vadd.f32 %v85, %v422
  %v424 = vpop.f32.mrb[0].mxu0
  %v425 = vpop.f32.mrb[0].mxu0
  %v426 = vadd.f32 %v85, %v425
  %v427 = vpop.f32.mrb[0].mxu0
  %428 = vmatprep.mubr.bf16.mxu0 0
  %429 = vmatmul.mubr.bf16.gmra.mrb[0].mxu0 %v267
  %v430 = vpop.f32.mrb[0].mxu0
  %v431 = vadd.f32 %v85, %v430
  %v432 = vpop.f32.mrb[0].mxu0
  %v433 = vpop.f32.mrb[0].mxu0
  %v434 = vadd.f32 %v85, %v433
  %v435 = vpop.f32.mrb[0].mxu0
  %436 = vmatprep.mubr.bf16.mxu0 0
  %437 = vmatmul.mubr.bf16.gmra.mrb[0].mxu0 %v270
  %v438 = vpop.f32.mrb[0].mxu0
  %v439 = vadd.f32 %v85, %v438
  %v440 = vpop.f32.mrb[0].mxu0
  %v441 = vpop.f32.mrb[0].mxu0
  %v442 = vadd.f32 %v85, %v441
  %v443 = vpop.f32.mrb[0].mxu0
  %444 = vmatprep.mubr.bf16.mxu0 0
  %445 = vmatmul.mubr.bf16.gmra.mrb[0].mxu0 %v273
  %v446 = vpop.f32.mrb[0].mxu0
  %v447 = vadd.f32 %v85, %v446
  %v448 = vpop.f32.mrb[0].mxu0
  %v449 = vpop.f32.mrb[0].mxu0
  %v450 = vadd.f32 %v85, %v449
  %v451 = vpop.f32.mrb[0].mxu0
  %452 = vmatprep.mubr.bf16.mxu0 0
  %453 = vmatmul.mubr.bf16.gmra.mrb[0].mxu0 %v276
  %v454 = vpop.f32.mrb[0].mxu0
  %v455 = vadd.f32 %v85, %v454
  %v456 = vpop.f32.mrb[0].mxu0
  %v457 = vpop.f32.mrb[0].mxu0
  %v458 = vadd.f32 %v85, %v457
  %v459 = vpop.f32.mrb[0].mxu0
  %460 = vmatprep.mubr.bf16.mxu0 0
  %461 = vmatmul.mubr.bf16.gmra.mrb[0].mxu0 %v279
  %v462 = vpop.f32.mrb[0].mxu0
  %v463 = vadd.f32 %v85, %v462
  %v464 = vpop.f32.mrb[0].mxu0
  %v465 = vpop.f32.mrb[0].mxu0
  %v466 = vadd.f32 %v85, %v465
  %v467 = vpop.f32.mrb[0].mxu0
  %468 = vmatprep.mubr.bf16.mxu0 0
  %469 = vmatmul.mubr.bf16.gmra.mrb[0].mxu0 %v282
  %v470 = vpop.f32.mrb[0].mxu0
  %v471 = vadd.f32 %v85, %v470
  %v472 = vpop.f32.mrb[0].mxu0
  %v473 = vpop.f32.mrb[0].mxu0
  %v474 = vadd.f32 %v85, %v473
  %v475 = vpop.f32.mrb[0].mxu0
  %476 = vmatprep.mubr.bf16.mxu0 0
  %477 = vmatmul.mubr.bf16.gmra.mrb[0].mxu0 %v285
  %v478 = vpop.f32.mrb[0].mxu0
  %v479 = vadd.f32 %v85, %v478
  %v480 = vpop.f32.mrb[0].mxu0
  %v481 = vpop.f32.mrb[0].mxu0
  %v482 = vadd.f32 %v85, %v481
  %v483 = vpop.f32.mrb[0].mxu0
  %484 = vmatprep.mubr.bf16.mxu0 0
  %485 = vmatmul.mubr.bf16.gmra.mrb[0].mxu0 %v288
  %v486 = vpop.f32.mrb[0].mxu0
  %v487 = vadd.f32 %v85, %v486
  %v488 = vpop.f32.mrb[0].mxu0
  %v489 = vpop.f32.mrb[0].mxu0
  %v490 = vadd.f32 %v85, %v489
  %v491 = vpop.f32.mrb[0].mxu0
  %492 = vmatprep.mubr.bf16.mxu0 0
  %493 = vmatmul.mubr.bf16.gmra.mrb[0].mxu0 %v291
  %v494 = vpop.f32.mrb[0].mxu0
  %v495 = vadd.f32 %v85, %v494
  %v496 = vpop.f32.mrb[0].mxu0
  %v497 = vpop.f32.mrb[0].mxu0
  %v498 = vadd.f32 %v85, %v497
  %v499 = vpop.f32.mrb[0].mxu0
  %500 = vmatprep.mubr.bf16.mxu0 0
  %501 = vmatmul.mubr.bf16.gmra.mrb[0].mxu0 %v294
  %v502 = vpop.f32.mrb[0].mxu0
  %v503 = vadd.f32 %v85, %v502
  %v504 = vpop.f32.mrb[0].mxu0
  %v505 = vpop.f32.mrb[0].mxu0
  %v506 = vadd.f32 %v85, %v505
  %v507 = vpop.f32.mrb[0].mxu0
  %508 = vmatprep.mubr.bf16.mxu0 0
  %509 = vmatmul.mubr.bf16.gmra.mrb[0].mxu0 %v297
  %v510 = vpop.f32.mrb[0].mxu0
  %v511 = vadd.f32 %v85, %v510
  %v512 = vpop.f32.mrb[0].mxu0
  %v513 = vpop.f32.mrb[0].mxu0
  %v514 = vadd.f32 %v85, %v513
  %v515 = vpop.f32.mrb[0].mxu0
  %516 = vmatprep.mubr.bf16.mxu0 0
  %517 = vmatmul.mubr.bf16.gmra.mrb[0].mxu0 %v300
  %v518 = vpop.f32.mrb[0].mxu0
  %v519 = vadd.f32 %v85, %v518
  %v520 = vpop.f32.mrb[0].mxu0
  %v521 = vpop.f32.mrb[0].mxu0
  %v522 = vadd.f32 %v85, %v521
  %v523 = vpop.f32.mrb[0].mxu0
  %524 = vmatprep.mubr.bf16.mxu0 0
  %525 = vmatmul.mubr.bf16.gmra.mrb[0].mxu0 %v303
  %v526 = vpop.f32.mrb[0].mxu0
  %v527 = vadd.f32 %v85, %v526
  %v528 = vpop.f32.mrb[0].mxu0
  %v529 = vpop.f32.mrb[0].mxu0
  %v530 = vadd.f32 %v85, %v529
  %v531 = vpop.f32.mrb[0].mxu0
  %532 = vmatprep.mubr.bf16.mxu0 0
  %533 = vmatmul.mubr.bf16.gmra.mrb[0].mxu0 %v306
  %v534 = vpop.f32.mrb[0].mxu0
  %v535 = vadd.f32 %v85, %v534
  %v536 = vpop.f32.mrb[0].mxu0
  %v537 = vpop.f32.mrb[0].mxu0
  %v538 = vadd.f32 %v85, %v537
  %v539 = vpop.f32.mrb[0].mxu0
  %540 = vmatprep.mubr.bf16.mxu0 0
  %541 = vmatmul.mubr.bf16.gmra.mrb[0].mxu0 %v309
  %v542 = vpop.f32.mrb[0].mxu0
  %v543 = vadd.f32 %v85, %v542
  %v544 = vpop.f32.mrb[0].mxu0
  %v545 = vpop.f32.mrb[0].mxu0
  %v546 = vadd.f32 %v85, %v545
  %v547 = vpop.f32.mrb[0].mxu0
  %548 = vmatprep.mubr.bf16.mxu0 0
  %549 = vmatmul.mubr.bf16.gmra.mrb[0].mxu0 %v312
  %v550 = vpop.f32.mrb[0].mxu0
  %v551 = vadd.f32 %v85, %v550
  %v552 = vpop.f32.mrb[0].mxu0
  %v553 = vpop.f32.mrb[0].mxu0
  %v554 = vadd.f32 %v85, %v553
  %v555 = vpop.f32.mrb[0].mxu0
  %556 = vmatprep.mubr.bf16.mxu0 0
  %557 = vmatmul.mubr.bf16.gmra.mrb[0].mxu0 %v315
  %v558 = vpop.f32.mrb[0].mxu0
  %v559 = vadd.f32 %v85, %v558
  %v560 = vpop.f32.mrb[0].mxu0
  %v561 = vpop.f32.mrb[0].mxu0
  %v562 = vadd.f32 %v85, %v561
  %v563 = vpop.f32.mrb[0].mxu0
  %564 = vmatprep.mubr.bf16.mxu0 0
  %565 = vmatmul.mubr.bf16.gmra.mrb[0].mxu0 %v318
  %v566 = vpop.f32.mrb[0].mxu0
  %v567 = vadd.f32 %v85, %v566
  %v568 = vpop.f32.mrb[0].mxu0
  %v569 = vpop.f32.mrb[0].mxu0
  %v570 = vadd.f32 %v85, %v569
  %v571 = vpop.f32.mrb[0].mxu0
  %572 = vmatprep.mubr.bf16.mxu0 0
  %573 = vmatmul.mubr.bf16.gmra.mrb[0].mxu0 %v321
  %v574 = vpop.f32.mrb[0].mxu0
  %v575 = vadd.f32 %v85, %v574
  %v576 = vpop.f32.mrb[0].mxu0
  %v577 = vpop.f32.mrb[0].mxu0
  %v578 = vadd.f32 %v85, %v577
  %v579 = vpop.f32.mrb[0].mxu0
  %580 = vmatprep.mubr.bf16.mxu0 0
  %581 = vmatmul.mubr.bf16.gmra.mrb[0].mxu0 %v324
  %v582 = vpop.f32.mrb[0].mxu0
  %v583 = vadd.f32 %v85, %v582
  %v584 = vpop.f32.mrb[0].mxu0
  %v585 = vpop.f32.mrb[0].mxu0
  %v586 = vadd.f32 %v85, %v585
  %v587 = vpop.f32.mrb[0].mxu0
  %588 = vmatprep.mubr.bf16.mxu0 0
  %589 = vmatmul.mubr.bf16.gmra.mrb[0].mxu0 %v327
  %v590 = vpop.f32.mrb[0].mxu0
  %v591 = vadd.f32 %v85, %v590
  %v592 = vpop.f32.mrb[0].mxu0
  %v593 = vpop.f32.mrb[0].mxu0
  %v594 = vadd.f32 %v85, %v593
  %v595 = vpop.f32.mrb[0].mxu0
  %596 = vmatprep.mubr.bf16.mxu0 0
  %597 = vmatmul.mubr.bf16.gmra.mrb[0].mxu0 %v330
  %v598 = vpop.f32.mrb[0].mxu0
  %v599 = vadd.f32 %v85, %v598
  %v600 = vpop.f32.mrb[0].mxu0
  %v601 = vpop.f32.mrb[0].mxu0
  %v602 = vadd.f32 %v85, %v601
  %v603 = vpop.f32.mrb[0].mxu0
  %604 = vmatprep.mubr.bf16.mxu0 0
  %605 = vmatmul.mubr.bf16.gmra.mrb[0].mxu0 %v333
  %v606 = vpop.f32.mrb[0].mxu0
  %v607 = vadd.f32 %v85, %v606
  %v608 = vpop.f32.mrb[0].mxu0
  %v609 = vpop.f32.mrb[0].mxu0
  %v610 = vadd.f32 %v85, %v609
  %v611 = vpop.f32.mrb[0].mxu0
  %612 = vmatprep.mubr.bf16.mxu0 0
  %613 = vmatmul.mubr.bf16.gmra.mrb[0].mxu0 %v336
  %v614 = vpop.f32.mrb[0].mxu0
  %v615 = vadd.f32 %v85, %v614
  %v616 = vpop.f32.mrb[0].mxu0
  %v617 = vpop.f32.mrb[0].mxu0
  %v618 = vadd.f32 %v85, %v617
  %v619 = vpop.f32.mrb[0].mxu0
  %620 = vmatprep.mubr.bf16.mxu0 0
  %621 = vmatmul.mubr.bf16.gmra.mrb[0].mxu0 %v339
  %v622 = vpop.f32.mrb[0].mxu0
  %v623 = vadd.f32 %v85, %v622
  %v624 = vpop.f32.mrb[0].mxu0
  %v625 = vpop.f32.mrb[0].mxu0
  %v626 = vadd.f32 %v85, %v625
  %v627 = vpop.f32.mrb[0].mxu0
  %628 = vmatprep.mubr.bf16.mxu0 0
  %629 = vmatmul.mubr.bf16.gmra.mrb[0].mxu0 %v342
  %v630 = vpop.f32.mrb[0].mxu0
  %v631 = vadd.f32 %v85, %v630
  %v632 = vpop.f32.mrb[0].mxu0
  %v633 = vpop.f32.mrb[0].mxu0
  %v634 = vadd.f32 %v85, %v633
  %v635 = vpop.f32.mrb[0].mxu0
  %636 = vdwg.mxu0
  %v637 = vpack.c.bf16 %v386, %v383
  %v638 = vpack.c.bf16 %v394, %v391
  %v639 = vpack.c.bf16 %v402, %v399
  %v640 = vpack.c.bf16 %v410, %v407
  %v641 = vpack.c.bf16 %v418, %v415
  %v642 = vpack.c.bf16 %v426, %v423
  %v643 = vpack.c.bf16 %v434, %v431
  %v644 = vpack.c.bf16 %v442, %v439
  %v645 = vpack.c.bf16 %v450, %v447
  %v646 = vpack.c.bf16 %v458, %v455
  %v647 = vpack.c.bf16 %v466, %v463
  %v648 = vpack.c.bf16 %v474, %v471
  %v649 = vpack.c.bf16 %v482, %v479
  %v650 = vpack.c.bf16 %v490, %v487
  %v651 = vpack.c.bf16 %v498, %v495
  %v652 = vpack.c.bf16 %v506, %v503
  %v653 = vpack.c.bf16 %v514, %v511
  %v654 = vpack.c.bf16 %v522, %v519
  %v655 = vpack.c.bf16 %v530, %v527
  %v656 = vpack.c.bf16 %v538, %v535
  %v657 = vpack.c.bf16 %v546, %v543
  %v658 = vpack.c.bf16 %v554, %v551
  %v659 = vpack.c.bf16 %v562, %v559
  %v660 = vpack.c.bf16 %v570, %v567
  %v661 = vpack.c.bf16 %v578, %v575
  %v662 = vpack.c.bf16 %v586, %v583
  %v663 = vpack.c.bf16 %v594, %v591
  %v664 = vpack.c.bf16 %v602, %v599
  %v665 = vpack.c.bf16 %v610, %v607
  %v666 = vpack.c.bf16 %v618, %v615
  %v667 = vpack.c.bf16 %v626, %v623
  %v668 = vpack.c.bf16 %v634, %v631
  %v701 = vunpack.c.l.b16 %v637
  %v702 = vunpack.c.h.b16 %v637
  %v703 = vunpack.c.l.b16 %v638
  %v704 = vunpack.c.h.b16 %v638
  %v705 = vunpack.c.l.b16 %v639
  %v706 = vunpack.c.h.b16 %v639
  %v707 = vunpack.c.l.b16 %v640
  %v708 = vunpack.c.h.b16 %v640
  %v709 = vunpack.c.l.b16 %v641
  %v710 = vunpack.c.h.b16 %v641
  %v711 = vunpack.c.l.b16 %v642
  %v712 = vunpack.c.h.b16 %v642
  %v713 = vunpack.c.l.b16 %v643
  %v714 = vunpack.c.h.b16 %v643
  %v715 = vunpack.c.l.b16 %v644
  %v716 = vunpack.c.h.b16 %v644
  %v717 = vunpack.c.l.b16 %v645
  %v718 = vunpack.c.h.b16 %v645
  %v719 = vunpack.c.l.b16 %v646
  %v720 = vunpack.c.h.b16 %v646
  %v721 = vunpack.c.l.b16 %v647
  %v722 = vunpack.c.h.b16 %v647
  %v723 = vunpack.c.l.b16 %v648
  %v724 = vunpack.c.h.b16 %v648
  %v725 = vunpack.c.l.b16 %v649
  %v726 = vunpack.c.h.b16 %v649
  %v727 = vunpack.c.l.b16 %v650
  %v728 = vunpack.c.h.b16 %v650
  %v729 = vunpack.c.l.b16 %v651
  %v730 = vunpack.c.h.b16 %v651
  %v731 = vunpack.c.l.b16 %v652
  %v732 = vunpack.c.h.b16 %v652
  %v733 = vunpack.c.l.b16 %v653
  %v734 = vunpack.c.h.b16 %v653
  %v735 = vunpack.c.l.b16 %v654
  %v736 = vunpack.c.h.b16 %v654
  %v737 = vunpack.c.l.b16 %v655
  %v738 = vunpack.c.h.b16 %v655
  %v739 = vunpack.c.l.b16 %v656
  %v740 = vunpack.c.h.b16 %v656
  %v741 = vunpack.c.l.b16 %v657
  %v742 = vunpack.c.h.b16 %v657
  %v743 = vunpack.c.l.b16 %v658
  %v744 = vunpack.c.h.b16 %v658
  %v745 = vunpack.c.l.b16 %v659
  %v746 = vunpack.c.h.b16 %v659
  %v747 = vunpack.c.l.b16 %v660
  %v748 = vunpack.c.h.b16 %v660
  %v749 = vunpack.c.l.b16 %v661
  %v750 = vunpack.c.h.b16 %v661
  %v751 = vunpack.c.l.b16 %v662
  %v752 = vunpack.c.h.b16 %v662
  %v753 = vunpack.c.l.b16 %v663
  %v754 = vunpack.c.h.b16 %v663
  %v755 = vunpack.c.l.b16 %v664
  %v756 = vunpack.c.h.b16 %v664
  %v757 = vunpack.c.l.b16 %v665
  %v758 = vunpack.c.h.b16 %v665
  %v759 = vunpack.c.l.b16 %v666
  %v760 = vunpack.c.h.b16 %v666
  %v761 = vunpack.c.l.b16 %v667
  %v762 = vunpack.c.h.b16 %v667
  %v763 = vunpack.c.l.b16 %v668
  %v764 = vunpack.c.h.b16 %v668
  %v765 = vpack.c.b16 %v701, %v701
  %v766 = vpack.c.b16 %v702, %v702
  %v767 = vpack.c.b16 %v703, %v703
  %v768 = vpack.c.b16 %v704, %v704
  %v769 = vpack.c.b16 %v705, %v705
  %v770 = vpack.c.b16 %v706, %v706
  %v771 = vpack.c.b16 %v707, %v707
  %v772 = vpack.c.b16 %v708, %v708
  %v773 = vpack.c.b16 %v709, %v709
  %v774 = vpack.c.b16 %v710, %v710
  %v775 = vpack.c.b16 %v711, %v711
  %v776 = vpack.c.b16 %v712, %v712
  %v777 = vpack.c.b16 %v713, %v713
  %v778 = vpack.c.b16 %v714, %v714
  %v779 = vpack.c.b16 %v715, %v715
  %v780 = vpack.c.b16 %v716, %v716
  %v781 = vpack.c.b16 %v717, %v717
  %v782 = vpack.c.b16 %v718, %v718
  %v783 = vpack.c.b16 %v719, %v719
  %v784 = vpack.c.b16 %v720, %v720
  %v785 = vpack.c.b16 %v721, %v721
  %v786 = vpack.c.b16 %v722, %v722
  %v787 = vpack.c.b16 %v723, %v723
  %v788 = vpack.c.b16 %v724, %v724
  %v789 = vpack.c.b16 %v725, %v725
  %v790 = vpack.c.b16 %v726, %v726
  %v791 = vpack.c.b16 %v727, %v727
  %v792 = vpack.c.b16 %v728, %v728
  %v793 = vpack.c.b16 %v729, %v729
  %v794 = vpack.c.b16 %v730, %v730
  %v795 = vpack.c.b16 %v731, %v731
  %v796 = vpack.c.b16 %v732, %v732
  %v797 = vpack.c.b16 %v733, %v733
  %v798 = vpack.c.b16 %v734, %v734
  %v799 = vpack.c.b16 %v735, %v735
  %v800 = vpack.c.b16 %v736, %v736
  %v801 = vpack.c.b16 %v737, %v737
  %v802 = vpack.c.b16 %v738, %v738
  %v803 = vpack.c.b16 %v739, %v739
  %v804 = vpack.c.b16 %v740, %v740
  %v805 = vpack.c.b16 %v741, %v741
  %v806 = vpack.c.b16 %v742, %v742
  %v807 = vpack.c.b16 %v743, %v743
  %v808 = vpack.c.b16 %v744, %v744
  %v809 = vpack.c.b16 %v745, %v745
  %v810 = vpack.c.b16 %v746, %v746
  %v811 = vpack.c.b16 %v747, %v747
  %v812 = vpack.c.b16 %v748, %v748
  %v813 = vpack.c.b16 %v749, %v749
  %v814 = vpack.c.b16 %v750, %v750
  %v815 = vpack.c.b16 %v751, %v751
  %v816 = vpack.c.b16 %v752, %v752
  %v817 = vpack.c.b16 %v753, %v753
  %v818 = vpack.c.b16 %v754, %v754
  %v819 = vpack.c.b16 %v755, %v755
  %v820 = vpack.c.b16 %v756, %v756
  %v821 = vpack.c.b16 %v757, %v757
  %v822 = vpack.c.b16 %v758, %v758
  %v823 = vpack.c.b16 %v759, %v759
  %v824 = vpack.c.b16 %v760, %v760
  %v825 = vpack.c.b16 %v761, %v761
  %v826 = vpack.c.b16 %v762, %v762
  %v827 = vpack.c.b16 %v763, %v763
  %v828 = vpack.c.b16 %v764, %v764
  %vm893 = vcmask 257024
  %894 = vst.msk [vmem:[%s3] sm:$0xf] %vm893, %v765
  %895 = vst.msk [vmem:[%s3 + $0x4] sm:$0xf] %vm893, %v766
  %896 = vst.msk [vmem:[%s3 + $0x8] sm:$0xf] %vm893, %v767
  %897 = vst.msk [vmem:[%s3 + $0xc] sm:$0xf] %vm893, %v768
  %898 = vst.msk [vmem:[%s3 + $0x10] sm:$0xf] %vm893, %v769
  %899 = vst.msk [vmem:[%s3 + $0x14] sm:$0xf] %vm893, %v770
  %900 = vst.msk [vmem:[%s3 + $0x18] sm:$0xf] %vm893, %v771
  %901 = vst.msk [vmem:[%s3 + $0x1c] sm:$0xf] %vm893, %v772
  %902 = vst.msk [vmem:[%s3 + $0x20] sm:$0xf] %vm893, %v773
  %903 = vst.msk [vmem:[%s3 + $0x24] sm:$0xf] %vm893, %v774
  %904 = vst.msk [vmem:[%s3 + $0x28] sm:$0xf] %vm893, %v775
  %905 = vst.msk [vmem:[%s3 + $0x2c] sm:$0xf] %vm893, %v776
  %906 = vst.msk [vmem:[%s3 + $0x30] sm:$0xf] %vm893, %v777
  %907 = vst.msk [vmem:[%s3 + $0x34] sm:$0xf] %vm893, %v778
  %908 = vst.msk [vmem:[%s3 + $0x38] sm:$0xf] %vm893, %v779
  %909 = vst.msk [vmem:[%s3 + $0x3c] sm:$0xf] %vm893, %v780
  %910 = vst.msk [vmem:[%s3 + $0x40] sm:$0xf] %vm893, %v781
  %911 = vst.msk [vmem:[%s3 + $0x44] sm:$0xf] %vm893, %v782
  %912 = vst.msk [vmem:[%s3 + $0x48] sm:$0xf] %vm893, %v783
  %913 = vst.msk [vmem:[%s3 + $0x4c] sm:$0xf] %vm893, %v784
  %914 = vst.msk [vmem:[%s3 + $0x50] sm:$0xf] %vm893, %v785
  %915 = vst.msk [vmem:[%s3 + $0x54] sm:$0xf] %vm893, %v786
  %916 = vst.msk [vmem:[%s3 + $0x58] sm:$0xf] %vm893, %v787
  %917 = vst.msk [vmem:[%s3 + $0x5c] sm:$0xf] %vm893, %v788
  %918 = vst.msk [vmem:[%s3 + $0x60] sm:$0xf] %vm893, %v789
  %919 = vst.msk [vmem:[%s3 + $0x64] sm:$0xf] %vm893, %v790
  %920 = vst.msk [vmem:[%s3 + $0x68] sm:$0xf] %vm893, %v791
  %921 = vst.msk [vmem:[%s3 + $0x6c] sm:$0xf] %vm893, %v792
  %922 = vst.msk [vmem:[%s3 + $0x70] sm:$0xf] %vm893, %v793
  %923 = vst.msk [vmem:[%s3 + $0x74] sm:$0xf] %vm893, %v794
  %924 = vst.msk [vmem:[%s3 + $0x78] sm:$0xf] %vm893, %v795
  %925 = vst.msk [vmem:[%s3 + $0x7c] sm:$0xf] %vm893, %v796
  %926 = vst.msk [vmem:[%s3 + $0x80] sm:$0xf] %vm893, %v797
  %927 = vst.msk [vmem:[%s3 + $0x84] sm:$0xf] %vm893, %v798
  %928 = vst.msk [vmem:[%s3 + $0x88] sm:$0xf] %vm893, %v799
  %929 = vst.msk [vmem:[%s3 + $0x8c] sm:$0xf] %vm893, %v800
  %930 = vst.msk [vmem:[%s3 + $0x90] sm:$0xf] %vm893, %v801
  %931 = vst.msk [vmem:[%s3 + $0x94] sm:$0xf] %vm893, %v802
  %932 = vst.msk [vmem:[%s3 + $0x98] sm:$0xf] %vm893, %v803
  %933 = vst.msk [vmem:[%s3 + $0x9c] sm:$0xf] %vm893, %v804
  %934 = vst.msk [vmem:[%s3 + $0xa0] sm:$0xf] %vm893, %v805
  %935 = vst.msk [vmem:[%s3 + $0xa4] sm:$0xf] %vm893, %v806
  %936 = vst.msk [vmem:[%s3 + $0xa8] sm:$0xf] %vm893, %v807
  %937 = vst.msk [vmem:[%s3 + $0xac] sm:$0xf] %vm893, %v808
  %938 = vst.msk [vmem:[%s3 + $0xb0] sm:$0xf] %vm893, %v809
  %939 = vst.msk [vmem:[%s3 + $0xb4] sm:$0xf] %vm893, %v810
  %940 = vst.msk [vmem:[%s3 + $0xb8] sm:$0xf] %vm893, %v811
  %941 = vst.msk [vmem:[%s3 + $0xbc] sm:$0xf] %vm893, %v812
  %942 = vst.msk [vmem:[%s3 + $0xc0] sm:$0xf] %vm893, %v813
  %943 = vst.msk [vmem:[%s3 + $0xc4] sm:$0xf] %vm893, %v814
  %944 = vst.msk [vmem:[%s3 + $0xc8] sm:$0xf] %vm893, %v815
  %945 = vst.msk [vmem:[%s3 + $0xcc] sm:$0xf] %vm893, %v816
  %946 = vst.msk [vmem:[%s3 + $0xd0] sm:$0xf] %vm893, %v817
  %947 = vst.msk [vmem:[%s3 + $0xd4] sm:$0xf] %vm893, %v818
  %948 = vst.msk [vmem:[%s3 + $0xd8] sm:$0xf] %vm893, %v819
  %949 = vst.msk [vmem:[%s3 + $0xdc] sm:$0xf] %vm893, %v820
  %950 = vst.msk [vmem:[%s3 + $0xe0] sm:$0xf] %vm893, %v821
  %951 = vst.msk [vmem:[%s3 + $0xe4] sm:$0xf] %vm893, %v822
  %952 = vst.msk [vmem:[%s3 + $0xe8] sm:$0xf] %vm893, %v823
  %953 = vst.msk [vmem:[%s3 + $0xec] sm:$0xf] %vm893, %v824
  %954 = vst.msk [vmem:[%s3 + $0xf0] sm:$0xf] %vm893, %v825
  %955 = vst.msk [vmem:[%s3 + $0xf4] sm:$0xf] %vm893, %v826
  %956 = vst.msk [vmem:[%s3 + $0xf8] sm:$0xf] %vm893, %v827
  %957 = vst.msk [vmem:[%s3 + $0xfc] sm:$0xf] %vm893, %v828
  // Predicated region
  $region14: #{tpu_custom_call.1} parent=0 // pred_check
    _
  $region15: #{tpu_custom_call.1} parent=0 // pred_check_branch
    %959 = sbr.rel (0) target = $region17
  $region16: #{tpu_custom_call.1} parent=0 // pred_region
    _
  $region17: #{tpu_custom_call.1} parent=0 // pred_fallthru
    _
  // Predicated region
  $region18: #{tpu_custom_call.1} parent=0 // pred_check
    _
  $region19: #{tpu_custom_call.1} parent=0 // pred_check_branch
    %961 = sbr.rel (0) target = $region21
  $region20: #{tpu_custom_call.1} parent=0 // pred_region
    _
  $region21: #{tpu_custom_call.1} parent=0 // pred_fallthru
    _

</llo_original>
